<compile_context>
chip_gen: v6e
topology: v6e:2x2x1
jax: 0.10.0
libtpu: 0.0.40
codegen_flags: <defaults>
</compile_context>

<pallas_src>
import functools

import jax
import jax.numpy as jnp
from jax.experimental import pallas as pl
from jax.experimental.pallas import tpu as pltpu


def _elu_plus_one(x):
    # qk_map(x) = elu(x) + 1 (alpha=1); clamp exp arg so the unselected branch
    # never produces inf.
    return jnp.where(x > 0, x + 1.0, jnp.exp(jnp.minimum(x, 0.0)))


def _layernorm(x, gamma, beta, eps=1e-5):
    # Two-pass layernorm (mean, then variance of the centered values) — matches
    # PyTorch LayerNorm numerics better than E[x^2]-E[x]^2.
    mu = jnp.mean(x, axis=-1, keepdims=True)
    xc = x - mu
    var = jnp.mean(xc * xc, axis=-1, keepdims=True)
    return xc * jax.lax.rsqrt(var + eps) * gamma + beta


# --------------------------- pass 1: source reduction ---------------------------
def _kv_kernel(src_ref, wk_ref, wv_ref, mask_ref,
               kv_out_ref, ksum_out_ref,
               kv_acc, ksum_acc, *, inv_s):
    st = pl.program_id(1)

    @pl.when(st == 0)
    def _init():
        kv_acc[...] = jnp.zeros_like(kv_acc)
        ksum_acc[...] = jnp.zeros_like(ksum_acc)

    src = src_ref[0]                                         # [TS, C] bf16
    k = jnp.dot(src, wk_ref[...], preferred_element_type=jnp.float32)
    v = jnp.dot(src, wv_ref[...], preferred_element_type=jnp.float32)
    Km = _elu_plus_one(k)                                    # [TS, C] f32
    Vn = v * inv_s                                           # [TS, C] f32
    # K^T V for this S-chunk: [C,TS] x [TS,C] on the MXU (bf16, f32 accumulate).
    kv_acc[...] += jax.lax.dot_general(
        Km.astype(jnp.bfloat16), Vn.astype(jnp.bfloat16),
        (((0,), (0,)), ((), ())),
        preferred_element_type=jnp.float32)                  # [C, C]
    ksum_acc[...] += jnp.sum(Km, axis=0, keepdims=True)      # [1, C] f32

    @pl.when(st == pl.num_programs(1) - 1)
    def _finalize():
        # Only the per-head diagonal blocks of K^T V are meaningful; zero the
        # rest so the full-width matmul in pass 2 yields the per-head results.
        kv_out_ref[0] = (kv_acc[...] * mask_ref[...].astype(jnp.float32)
                         ).astype(kv_out_ref.dtype)
        ksum_out_ref[0] = ksum_acc[...]


# ------------------------ pass 2: attention + merge + MLP ------------------------
def _attn_mlp_kernel(x_ref, kv_ref, ksum_ref, mask_ref,
                     wq_ref, wm_ref, w1a_ref, w1b_ref, w2_ref,
                     g1_ref, b1_ref, g2_ref, b2_ref,
                     out_ref, *, seq_s, attn_eps):
    x = x_ref[0]                                             # [TL, C] f32
    x_bf = x.astype(jnp.bfloat16)

    q = jnp.dot(x_bf, wq_ref[...], preferred_element_type=jnp.float32)
    Qm = _elu_plus_one(q)                                    # [TL, C] f32

    # numerator: concat_h(Q_h @ KV_h) == Qm @ (head-block-masked K^T V)
    num = jnp.dot(Qm.astype(jnp.bfloat16), kv_ref[0],
                  preferred_element_type=jnp.float32)        # [TL, C]
    # denominator: per-head segmented lane-sum of Qm * Ksum via one bf16 matmul
    # against the {0,1} head mask (exact in bf16), f32 accumulation.
    den = jnp.dot((Qm * ksum_ref[0]).astype(jnp.bfloat16), mask_ref[...],
                  preferred_element_type=jnp.float32) + attn_eps
    z = pl.reciprocal(den, approx=True)
    attn = num * z * float(seq_s)                            # [TL, C] f32

    # merge (concat over heads then Linear) == attn @ Wm
    merged = jnp.dot(attn.astype(jnp.bfloat16), wm_ref[...],
                     preferred_element_type=jnp.float32)     # [TL, C]
    msg = _layernorm(merged, g1_ref[...], b1_ref[...])

    # MLP on concat([x, msg]) without materializing the concat: split W1 rows.
    h1 = (jnp.dot(x_bf, w1a_ref[...], preferred_element_type=jnp.float32)
          + jnp.dot(msg.astype(jnp.bfloat16), w1b_ref[...],
                    preferred_element_type=jnp.float32))     # [TL, 2C]
    h1 = jnp.maximum(h1, 0.0)
    m2 = jnp.dot(h1.astype(jnp.bfloat16), w2_ref[...],
                 preferred_element_type=jnp.float32)         # [TL, C]
    m2 = _layernorm(m2, g2_ref[...], b2_ref[...])

    out_ref[0] = (x + m2).astype(out_ref.dtype)


# ---------------------------------- wrapper ----------------------------------
def encoder_layer_pallas(x, source, params, *, nhead, block_l=None, block_s=None):
    N, L, C = x.shape
    _, S, _ = source.shape
    assert C % nhead == 0
    D = C // nhead
    wq, wk, wv, wm, w1, w2, g1, b1, g2, b2 = params

    if block_l is None:
        block_l = min(L, 512)
    if block_s is None:
        block_s = min(S, 512)
    assert L % block_l == 0, "L must be divisible by block_l"
    assert S % block_s == 0, "S must be divisible by block_s"
    num_l = L // block_l
    num_s = S // block_s

    bf = jnp.bfloat16
    # Weights / source only ever feed bf16 MXU matmuls -> ship them bf16.
    src_bf = source.astype(bf)
    wq_b, wk_b, wv_b, wm_b, w2_b = (w.astype(bf) for w in (wq, wk, wv, wm, w2))
    w1a_b = w1[:C, :].astype(bf)     # multiplies x
    w1b_b = w1[C:, :].astype(bf)     # multiplies the attention message

    # {0,1} same-head mask, exact in bf16. Built once here (no per-tile iota).
    hh = jnp.arange(C, dtype=jnp.int32) // D
    head_mask = (hh[:, None] == hh[None, :]).astype(bf)      # [C, C]

    cparams = pltpu.CompilerParams(vmem_limit_bytes=32 * 1024 * 1024)

    def const_spec(shape):
        return pl.BlockSpec(shape, lambda n, t: (0,) * len(shape))

    # ---- pass 1: per-batch head-masked K^T V and K column sums ----
    kv_cost = pl.CostEstimate(
        flops=int(6 * N * S * C * C),
        transcendentals=int(N * S * C),
        bytes_accessed=int(2 * N * S * C + 2 * (2 * C * C) + 2 * C * C
                           + 2 * N * C * C + 4 * N * C))
    kv, ksum = pl.pallas_call(
        functools.partial(_kv_kernel, inv_s=1.0 / S),
        out_shape=(jax.ShapeDtypeStruct((N, C, C), bf),
                   jax.ShapeDtypeStruct((N, 1, C), jnp.float32)),
        grid_spec=pltpu.PrefetchScalarGridSpec(
            num_scalar_prefetch=0,
            grid=(N, num_s),
            in_specs=[
                pl.BlockSpec((1, block_s, C), lambda n, s: (n, s, 0)),  # source
                const_spec((C, C)),                                     # wk
                const_spec((C, C)),                                     # wv
                const_spec((C, C)),                                     # head mask
            ],
            out_specs=[
                pl.BlockSpec((1, C, C), lambda n, s: (n, 0, 0)),        # KV
                pl.BlockSpec((1, 1, C), lambda n, s: (n, 0, 0)),        # Ksum
            ],
            scratch_shapes=[pltpu.VMEM((C, C), jnp.float32),
                            pltpu.VMEM((1, C), jnp.float32)],
        ),
        compiler_params=pltpu.CompilerParams(
            dimension_semantics=("parallel", "arbitrary"),
            vmem_limit_bytes=32 * 1024 * 1024),
        cost_estimate=kv_cost,
    )(src_bf, wk_b, wv_b, head_mask)

    # ---- pass 2: attention numerator/denominator, merge, MLP, residual ----
    main_cost = pl.CostEstimate(
        flops=int(20 * N * L * C * C),
        transcendentals=int(2 * N * L * C),
        bytes_accessed=int(4 * (2 * N * L * C) + 2 * N * C * C + 4 * N * C
                           + 2 * (2 * C * C + 2 * 2 * C * 2 * C + 2 * C * C)
                           + 4 * 4 * C))
    out = pl.pallas_call(
        functools.partial(_attn_mlp_kernel, seq_s=S, attn_eps=1e-6),
        out_shape=jax.ShapeDtypeStruct((N, L, C), jnp.float32),
        grid_spec=pltpu.PrefetchScalarGridSpec(
            num_scalar_prefetch=0,
            grid=(N, num_l),
            in_specs=[
                pl.BlockSpec((1, block_l, C), lambda n, l: (n, l, 0)),  # x
                pl.BlockSpec((1, C, C), lambda n, l: (n, 0, 0)),        # KV
                pl.BlockSpec((1, 1, C), lambda n, l: (n, 0, 0)),        # Ksum
                const_spec((C, C)),            # head mask
                const_spec((C, C)),            # wq
                const_spec((C, C)),            # wm (merge)
                const_spec((C, 2 * C)),        # w1a (mlp[0], x rows)
                const_spec((C, 2 * C)),        # w1b (mlp[0], msg rows)
                const_spec((2 * C, C)),        # w2 (mlp[2])
                const_spec((1, C)),            # norm1 gamma
                const_spec((1, C)),            # norm1 beta
                const_spec((1, C)),            # norm2 gamma
                const_spec((1, C)),            # norm2 beta
            ],
            out_specs=pl.BlockSpec((1, block_l, C), lambda n, l: (n, l, 0)),
        ),
        compiler_params=pltpu.CompilerParams(
            # No cross-tile scratch dependency anymore -> both axes parallel
            # (keeps both v7x TensorCores busy even when N == 1).
            dimension_semantics=("parallel", "parallel"),
            vmem_limit_bytes=32 * 1024 * 1024),
        cost_estimate=main_cost,
    )(x, kv, ksum, head_mask,
      wq_b, wm_b, w1a_b, w1b_b, w2_b, g1, b1, g2, b2)
    return out


# ---------------- pure-JAX reference (mirrors the PyTorch forward) ----------------
def encoder_layer_ref(x, source, params, *, nhead, mixed=False):
    """mixed=False -> faithful f32 reference.
       mixed=True  -> emulates the kernel's bf16 MXU inputs by rounding matmul
       operands bf16->f32 (no bf16 dots are issued, so this also runs on the
       CPU backend used by interpret-mode sandboxes)."""
    wq, wk, wv, wm, w1, w2, g1, b1, g2, b2 = params
    N, L, C = x.shape
    S = source.shape[1]
    D = C // nhead
    f32 = jnp.float32

    def rnd(t):
        return t.astype(jnp.bfloat16).astype(f32) if mixed else t

    def mm(a, b):
        return jnp.dot(rnd(a), rnd(b), preferred_element_type=f32,
                       precision="highest")

    def ln(t, g, b, eps=1e-5):
        mu = jnp.mean(t, axis=-1, keepdims=True)
        tc = t - mu
        var = jnp.mean(tc * tc, axis=-1, keepdims=True)
        return tc / jnp.sqrt(var + eps) * g + b

    elu1 = lambda t: jnp.where(t > 0, t + 1.0, jnp.exp(jnp.minimum(t, 0.0)))

    q = mm(x, wq).reshape(N, L, nhead, D)
    k = mm(source, wk).reshape(N, S, nhead, D)
    v = mm(source, wv).reshape(N, S, nhead, D)
    Q, K = elu1(q), elu1(k)
    vv = v / S
    KV = jnp.einsum('nshd,nshv->nhdv', rnd(K), rnd(vv),
                    preferred_element_type=f32, precision="highest")
    ksum = K.sum(axis=1)                                       # [N, H, D]
    den = jnp.sum(rnd(Q * ksum[:, None]), axis=-1) + 1e-6      # [N, L, H]
    num = jnp.einsum('nlhd,nhdv->nlhv', rnd(Q), rnd(KV),
                     preferred_element_type=f32, precision="highest")
    msg = (num / den[..., None] * S).reshape(N, L, C)
    msg = mm(msg, wm)
    msg = ln(msg, g1[0], b1[0])
    h = jnp.maximum(mm(jnp.concatenate([x, msg], axis=-1), w1), 0.0)
    m2 = ln(mm(h, w2), g2[0], b2[0])
    return x + m2


if __name__ == "__main__":
    # Small but TPU-friendly shapes (C a multiple of 128 keeps lanes dense);
    # two L tiles and two S chunks exercise both grid axes / accumulators.
    N, L, S, d_model, nhead = 2, 64, 32, 128, 8

    key = jax.random.PRNGKey(0)
    ks = jax.random.split(key, 8)
    scale = 0.1
    # nn.Linear stores [out, in]; weights are built directly in [in, out] (== W.T).
    wq = scale * jax.random.normal(ks[0], (d_model, d_model), jnp.float32)
    wk = scale * jax.random.normal(ks[1], (d_model, d_model), jnp.float32)
    wv = scale * jax.random.normal(ks[2], (d_model, d_model), jnp.float32)
    wm = scale * jax.random.normal(ks[3], (d_model, d_model), jnp.float32)
    w1 = scale * jax.random.normal(ks[4], (2 * d_model, 2 * d_model), jnp.float32)
    w2 = scale * jax.random.normal(ks[5], (2 * d_model, d_model), jnp.float32)
    g1 = jnp.ones((1, d_model), jnp.float32)
    b1 = jnp.zeros((1, d_model), jnp.float32)
    g2 = jnp.ones((1, d_model), jnp.float32)
    b2 = jnp.zeros((1, d_model), jnp.float32)
    params = (wq, wk, wv, wm, w1, w2, g1, b1, g2, b2)

    x = jax.random.normal(ks[6], (N, L, d_model), jnp.float32)
    source = jax.random.normal(ks[7], (N, S, d_model), jnp.float32)

    out = encoder_layer_pallas(x, source, params, nhead=nhead,
                               block_l=32, block_s=16)
    out = jax.block_until_ready(out)
    assert out.shape == (N, L, d_model)
    assert bool(jnp.all(jnp.isfinite(out)))

    # Check against a reference that mirrors the kernel's mixed precision.
    ref_mixed = encoder_layer_ref(x, source, params, nhead=nhead, mixed=True)
    err_mixed = float(jnp.max(jnp.abs(out - ref_mixed)))
    assert err_mixed < 5e-2, f"mismatch vs mixed-precision reference: {err_mixed}"

    # Sanity check against the full-f32 PyTorch-equivalent forward.
    ref_f32 = encoder_layer_ref(x, source, params, nhead=nhead, mixed=False)
    err_f32 = float(jnp.max(jnp.abs(out - ref_f32)))
    assert err_f32 < 2e-1, f"mismatch vs f32 reference: {err_f32}"

    print("KERNEL_OK")
</pallas_src>

<mosaic_0001>
module attributes {stable_mosaic.version = 11 : i64} {
  func.func @_kv_kernel(%arg0: i32, %arg1: i32, %arg2: memref<1x16x128xbf16, #tpu.memory_space<vmem>>, %arg3: memref<128x128xbf16, #tpu.memory_space<vmem>>, %arg4: memref<128x128xbf16, #tpu.memory_space<vmem>>, %arg5: memref<128x128xbf16, #tpu.memory_space<vmem>>, %arg6: memref<1x128x128xbf16, #tpu.memory_space<vmem>>, %arg7: memref<1x1x128xf32, #tpu.memory_space<vmem>>, %arg8: memref<128x128xf32, #tpu.memory_space<vmem>>, %arg9: memref<1x128xf32, #tpu.memory_space<vmem>>) attributes {dimension_semantics = [#tpu.dimension_semantics<parallel>, #tpu.dimension_semantics<arbitrary>], iteration_bounds = array<i64: 2, 2>, scalar_prefetch = 0 : i64, scratch_operands = 2 : i64, tpu.core_type = #tpu.core_type<tc>, window_params = [{transform_indices = @transform_0, window_bounds = array<i64: 1, 16, 128>}, {pipeline_mode = #tpu.pipeline_mode<synchronous>, transform_indices = @transform_1, window_bounds = array<i64: 128, 128>}, {pipeline_mode = #tpu.pipeline_mode<synchronous>, transform_indices = @transform_2, window_bounds = array<i64: 128, 128>}, {pipeline_mode = #tpu.pipeline_mode<synchronous>, transform_indices = @transform_3, window_bounds = array<i64: 128, 128>}, {transform_indices = @transform_4, window_bounds = array<i64: 1, 128, 128>}, {transform_indices = @transform_5, window_bounds = array<i64: 1, 1, 128>}]} {
    %c0_i32 = arith.constant 0 : i32
    %0 = arith.cmpi eq, %arg1, %c0_i32 : i32
    %1 = arith.extui %0 : i1 to i32
    %c0_i32_0 = arith.constant 0 : i32
    %2 = arith.cmpi ne, %1, %c0_i32_0 : i32
    scf.if %2 {
      %cst_23 = arith.constant 0.000000e+00 : f32
      %33 = vector.broadcast %cst_23 : f32 to vector<128x128xf32>
      %c0_24 = arith.constant 0 : index
      %c0_25 = arith.constant 0 : index
      %34 = vector.load %arg8[%c0_24, %c0_25] : memref<128x128xf32, #tpu.memory_space<vmem>>, vector<128x128xf32>
      tpu.vector_store %arg8[%c0_24, %c0_25], %33 {strides = array<i32>} : memref<128x128xf32, #tpu.memory_space<vmem>>, vector<128x128xf32>,
      %cst_26 = arith.constant 0.000000e+00 : f32
      %35 = vector.broadcast %cst_26 : f32 to vector<1x128xf32>
      %c0_27 = arith.constant 0 : index
      %c0_28 = arith.constant 0 : index
      %36 = vector.load %arg9[%c0_27, %c0_28] : memref<1x128xf32, #tpu.memory_space<vmem>>, vector<1x128xf32>
      tpu.vector_store %arg9[%c0_27, %c0_28], %35 {strides = array<i32>} : memref<1x128xf32, #tpu.memory_space<vmem>>, vector<1x128xf32>,
    } else {
    }
    %c0 = arith.constant 0 : index
    %c0_1 = arith.constant 0 : index
    %c0_2 = arith.constant 0 : index
    %3 = vector.load %arg2[%c0, %c0_1, %c0_2] : memref<1x16x128xbf16, #tpu.memory_space<vmem>>, vector<1x16x128xbf16>
    %4 = vector.shape_cast %3 : vector<1x16x128xbf16> to vector<16x128xbf16>
    %c0_3 = arith.constant 0 : index
    %c0_4 = arith.constant 0 : index
    %5 = vector.load %arg3[%c0_3, %c0_4] : memref<128x128xbf16, #tpu.memory_space<vmem>>, vector<128x128xbf16>
    %cst = arith.constant dense<0.000000e+00> : vector<16x128xf32>
    %6 = tpu.matmul %4, %5, %cst {dimension_numbers = #tpu.dot_dimension_numbers<[1], [0], [0], [1], [0, 0, 1, 1], [], []>} : vector<16x128xbf16>, vector<128x128xbf16>, vector<16x128xf32> -> vector<16x128xf32>
    %c0_5 = arith.constant 0 : index
    %c0_6 = arith.constant 0 : index
    %7 = vector.load %arg4[%c0_5, %c0_6] : memref<128x128xbf16, #tpu.memory_space<vmem>>, vector<128x128xbf16>
    %cst_7 = arith.constant dense<0.000000e+00> : vector<16x128xf32>
    %8 = tpu.matmul %4, %7, %cst_7 {dimension_numbers = #tpu.dot_dimension_numbers<[1], [0], [0], [1], [0, 0, 1, 1], [], []>} : vector<16x128xbf16>, vector<128x128xbf16>, vector<16x128xf32> -> vector<16x128xf32>
    %cst_8 = arith.constant 0.000000e+00 : f32
    %9 = vector.broadcast %cst_8 : f32 to vector<16x128xf32>
    %10 = arith.cmpf ogt, %6, %9 : vector<16x128xf32>
    %cst_9 = arith.constant 1.000000e+00 : f32
    %11 = vector.broadcast %cst_9 : f32 to vector<16x128xf32>
    %12 = arith.addf %6, %11 : vector<16x128xf32>
    %cst_10 = arith.constant 0.000000e+00 : f32
    %13 = vector.broadcast %cst_10 : f32 to vector<16x128xf32>
    %14 = arith.minimumf %6, %13 : vector<16x128xf32>
    %15 = math.exp %14 : vector<16x128xf32>
    %16 = arith.select %10, %12, %15 : vector<16x128xi1>, vector<16x128xf32>
    %cst_11 = arith.constant 3.125000e-02 : f32
    %17 = vector.broadcast %cst_11 : f32 to vector<16x128xf32>
    %18 = arith.mulf %8, %17 : vector<16x128xf32>
    %c0_12 = arith.constant 0 : index
    %c0_13 = arith.constant 0 : index
    %19 = vector.load %arg8[%c0_12, %c0_13] : memref<128x128xf32, #tpu.memory_space<vmem>>, vector<128x128xf32>
    %20 = arith.truncf %16 : vector<16x128xf32> to vector<16x128xbf16>
    %21 = arith.truncf %18 : vector<16x128xf32> to vector<16x128xbf16>
    %cst_14 = arith.constant dense<0.000000e+00> : vector<128x128xf32>
    %22 = tpu.matmul %20, %21, %cst_14 {dimension_numbers = #tpu.dot_dimension_numbers<[0], [0], [1], [1], [0, 1, 1, 1], [], []>} : vector<16x128xbf16>, vector<16x128xbf16>, vector<128x128xf32> -> vector<128x128xf32>
    %23 = arith.addf %19, %22 : vector<128x128xf32>
    %c0_15 = arith.constant 0 : index
    %c0_16 = arith.constant 0 : index
    %24 = vector.load %arg8[%c0_15, %c0_16] : memref<128x128xf32, #tpu.memory_space<vmem>>, vector<128x128xf32>
    tpu.vector_store %arg8[%c0_15, %c0_16], %23 {strides = array<i32>} : memref<128x128xf32, #tpu.memory_space<vmem>>, vector<128x128xf32>,
    %c0_17 = arith.constant 0 : index
    %c0_18 = arith.constant 0 : index
    %25 = vector.load %arg9[%c0_17, %c0_18] : memref<1x128xf32, #tpu.memory_space<vmem>>, vector<1x128xf32>
    %cst_19 = arith.constant dense<0.000000e+00> : vector<128xf32>
    %26 = vector.multi_reduction <add>, %16, %cst_19 [0] : vector<16x128xf32> to vector<128xf32>
    %27 = vector.shape_cast %26 : vector<128xf32> to vector<1x128xf32>
    %28 = arith.addf %25, %27 : vector<1x128xf32>
    %c0_20 = arith.constant 0 : index
    %c0_21 = arith.constant 0 : index
    %29 = vector.load %arg9[%c0_20, %c0_21] : memref<1x128xf32, #tpu.memory_space<vmem>>, vector<1x128xf32>
    tpu.vector_store %arg9[%c0_20, %c0_21], %28 {strides = array<i32>} : memref<1x128xf32, #tpu.memory_space<vmem>>, vector<1x128xf32>,
    %c1_i32 = arith.constant 1 : i32
    %30 = arith.cmpi eq, %arg1, %c1_i32 : i32
    %31 = arith.extui %30 : i1 to i32
    %c0_i32_22 = arith.constant 0 : i32
    %32 = arith.cmpi ne, %31, %c0_i32_22 : i32
    scf.if %32 {
      %c0_23 = arith.constant 0 : index
      %c0_24 = arith.constant 0 : index
      %33 = vector.load %arg8[%c0_23, %c0_24] : memref<128x128xf32, #tpu.memory_space<vmem>>, vector<128x128xf32>
      %c0_25 = arith.constant 0 : index
      %c0_26 = arith.constant 0 : index
      %34 = vector.load %arg5[%c0_25, %c0_26] : memref<128x128xbf16, #tpu.memory_space<vmem>>, vector<128x128xbf16>
      %35 = arith.extf %34 : vector<128x128xbf16> to vector<128x128xf32>
      %36 = arith.mulf %33, %35 : vector<128x128xf32>
      %37 = arith.truncf %36 : vector<128x128xf32> to vector<128x128xbf16>
      %c0_27 = arith.constant 0 : index
      %c0_28 = arith.constant 0 : index
      %c0_29 = arith.constant 0 : index
      %38 = vector.load %arg6[%c0_27, %c0_28, %c0_29] : memref<1x128x128xbf16, #tpu.memory_space<vmem>>, vector<1x128x128xbf16>
      %39 = vector.shape_cast %38 : vector<1x128x128xbf16> to vector<128x128xbf16>
      %40 = vector.shape_cast %37 : vector<128x128xbf16> to vector<1x128x128xbf16>
      tpu.vector_store %arg6[%c0_27, %c0_28, %c0_29], %40 {strides = array<i32>} : memref<1x128x128xbf16, #tpu.memory_space<vmem>>, vector<1x128x128xbf16>,
      %c0_30 = arith.constant 0 : index
      %c0_31 = arith.constant 0 : index
      %41 = vector.load %arg9[%c0_30, %c0_31] : memref<1x128xf32, #tpu.memory_space<vmem>>, vector<1x128xf32>
      %c0_32 = arith.constant 0 : index
      %c0_33 = arith.constant 0 : index
      %c0_34 = arith.constant 0 : index
      %42 = vector.load %arg7[%c0_32, %c0_33, %c0_34] : memref<1x1x128xf32, #tpu.memory_space<vmem>>, vector<1x1x128xf32>
      %43 = vector.shape_cast %42 : vector<1x1x128xf32> to vector<1x128xf32>
      %44 = vector.shape_cast %41 : vector<1x128xf32> to vector<1x1x128xf32>
      tpu.vector_store %arg7[%c0_32, %c0_33, %c0_34], %44 {strides = array<i32>} : memref<1x1x128xf32, #tpu.memory_space<vmem>>, vector<1x1x128xf32>,
    } else {
    }
    return
  }
  func.func @transform_0(%arg0: i32, %arg1: i32) -> (i32, i32, i32) {
    %c0_i32 = arith.constant 0 : i32
    %c0_i32_0 = arith.constant 0 : i32
    return %arg0, %arg1, %c0_i32 : i32, i32, i32
  }
  func.func @transform_1(%arg0: i32, %arg1: i32) -> (i32, i32) {
    %c0_i32 = arith.constant 0 : i32
    %c0_i32_0 = arith.constant 0 : i32
    %c0_i32_1 = arith.constant 0 : i32
    return %c0_i32, %c0_i32_0 : i32, i32
  }
  func.func @transform_2(%arg0: i32, %arg1: i32) -> (i32, i32) {
    %c0_i32 = arith.constant 0 : i32
    %c0_i32_0 = arith.constant 0 : i32
    %c0_i32_1 = arith.constant 0 : i32
    return %c0_i32, %c0_i32_0 : i32, i32
  }
  func.func @transform_3(%arg0: i32, %arg1: i32) -> (i32, i32) {
    %c0_i32 = arith.constant 0 : i32
    %c0_i32_0 = arith.constant 0 : i32
    %c0_i32_1 = arith.constant 0 : i32
    return %c0_i32, %c0_i32_0 : i32, i32
  }
  func.func @transform_4(%arg0: i32, %arg1: i32) -> (i32, i32, i32) {
    %c0_i32 = arith.constant 0 : i32
    %c0_i32_0 = arith.constant 0 : i32
    %c0_i32_1 = arith.constant 0 : i32
    return %arg0, %c0_i32, %c0_i32_0 : i32, i32, i32
  }
  func.func @transform_5(%arg0: i32, %arg1: i32) -> (i32, i32, i32) {
    %c0_i32 = arith.constant 0 : i32
    %c0_i32_0 = arith.constant 0 : i32
    %c0_i32_1 = arith.constant 0 : i32
    return %arg0, %c0_i32, %c0_i32_0 : i32, i32, i32
  }
}

</mosaic_0001>

<llo_original>
// kernel: tpu_custom_call.1
$region0: #{tpu_custom_call.1}
  #allocation0 [shape = 'u32[]', space=smem, size = 0x4, offset = 0x4, fixed_abs, tag = 'smem constant byte address 0x4 - core index']
  #allocation1 [shape = 'u32[144,128]{1,0:T(1,128)}', space=vmem, size = 0x12000, scoped, tag = 'internal scratch']
  #allocation2 [shape = 'f32[128,128]{1,0:T(8,128)}', space=vmem, size = 0x10000, scoped, tag = 'scratch operand']
  #allocation3 [shape = 'f32[1,128]{1,0:T(1,128)}', space=vmem, size = 0x200, scoped, tag = 'scratch operand']
  %s0 = inlined_call_operand.hbm [shape: bf16[2,32,128], index: 0, kind: input, shape index: {}]
  %s1 = inlined_call_operand.hbm [shape: bf16[128,128], index: 1, kind: input, shape index: {}]
  %s2 = inlined_call_operand.hbm [shape: bf16[128,128], index: 2, kind: input, shape index: {}]
  %s3 = inlined_call_operand.hbm [shape: bf16[128,128], index: 3, kind: input, shape index: {}]
  %s4 = inlined_call_operand.hbm [shape: bf16[2,128,128], index: 4, kind: output, shape index: {0}]
  %s5 = inlined_call_operand.hbm [shape: f32[2,1,128], index: 5, kind: output, shape index: {1}]
  %6 = xla_tuple %s4, %s5
  %s7 = sld [smem:[#allocation0]]
  $region81: #{tpu_custom_call.1} parent=0
    _
  %s9 = ssub.s32 1, %s7
  %s10 = scalar_select 0, %s9, %s7
  $region1: #{tpu_custom_call.1} parent=0
    #allocation4 [shape = 'u8[8192]{0}', space=vmem, size = 0x2000, scoped, tag = 'input window, operand 0']
    #allocation5 [shape = 's32[2]{0}', space=sflag, size = 0x8, scoped, tag = 'scoped memory for tpu_custom_call.1']
    #allocation6 [shape = 's32[2]{0}', space=sflag, size = 0x8, scoped, tag = 'scoped memory for tpu_custom_call.1']
    #allocation7 [shape = 'u8[32768]{0}', space=vmem, size = 0x8000, scoped, tag = 'input window, operand 1, single buffered']
    #allocation8 [shape = 's32[1]{0}', space=sflag, size = 0x4, scoped, tag = 'scoped memory for tpu_custom_call.1']
    #allocation9 [shape = 'u8[32768]{0}', space=vmem, size = 0x8000, scoped, tag = 'input window, operand 2, single buffered']
    #allocation10 [shape = 'u8[32768]{0}', space=vmem, size = 0x8000, scoped, tag = 'input window, operand 3, single buffered']
    #allocation11 [shape = 's32[1]{0}', space=sflag, size = 0x4, scoped, tag = 'scoped memory for tpu_custom_call.1']
    #allocation12 [shape = 'u8[65536]{0}', space=vmem, size = 0x10000, scoped, tag = 'output window, operand 0']
    #allocation13 [shape = 'u8[1024]{0}', space=vmem, size = 0x400, scoped, tag = 'output window, operand 1']
    #allocation14 [shape = 's32[2]{0}', space=sflag, size = 0x8, scoped, tag = 'scoped memory for tpu_custom_call.1']
    %11 = vsyncpa [#allocation5], 0
    %s12 = scalar_lea.sflag [#allocation5], 1
    %13 = vsyncpa %s12, 0
    %14 = vsyncpa [#allocation8], 0
    %15 = vsyncpa [#allocation11], 0
    %16 = vsyncpa [#allocation6], 0
    %s17 = scalar_lea.sflag [#allocation6], 1
    %18 = vsyncpa %s17, 0
    %19 = vsyncpa [#allocation14], 0
    %s20 = scalar_lea.sflag [#allocation14], 1
    %21 = vsyncpa %s20, 0
    loop: start=0, step=1, limit=6
    $region2: #{tpu_custom_call.1} parent=1 // loop_pre_header
      _
    $region3: #{tpu_custom_call.1} parent=1 // loop_header
      %s23 = sphi 0, %s27
      %p24 = scmp.ge.s32.totalorder %s23, 6
      %s30 = sphi 0, %s42
      %s31 = sphi 0, %s38
      %s32 = sphi 0, %s30
      %s33 = sphi 0, %s31
      %s34 = sphi 0, %s32
      %s35 = sphi 0, %s33
      %s47 = sphi 0, %s49
      %s50 = sphi 0, %s47
      %s51 = sphi 0, %s50
      %s67 = sphi 0, %s51
      %s71 = sphi 0, %s71
      %s73 = sphi 0, %s71
      %s74 = sphi 0, %s73
      %s88 = sphi 0, %s74
      %s92 = sphi 0, %s92
      %s94 = sphi 0, %s92
      %s95 = sphi 0, %s94
      %s109 = sphi 0, %s95
      %s113 = sphi 0, %s113
      %s115 = sphi 0, %s113
      %s116 = sphi 0, %s115
      %s130 = sphi 0, %s116
      %s136 = sphi 0, %s138
      %s139 = sphi 0, %s136
      %s140 = sphi 0, %s139
      %s156 = sphi 0, %s140
      %s162 = sphi 0, %s164
      %s165 = sphi 0, %s162
      %s166 = sphi 0, %s165
      %s182 = sphi 0, %s166
    $region4: #{tpu_custom_call.1} parent=1 // loop_header_branch
      %26 = sbr.rel (%p24) target = $region8
    $region5: #{tpu_custom_call.1} parent=1 // loop_body
      %s28 = ssub.s32 %s23, 1
      %s29 = ssub.s32 %s23, 2
      %s36 = sadd.s32 1, %s31
      %p37 = scmp.ge.s32.totalorder %s36, 2
      %s38 = scalar_select %p37, 0, %s36
      %s39 = sadd.s32 1, %s30
      %s40 = scalar_select %p37, %s39, %s30
      %p41 = scmp.ge.s32.totalorder %s40, 2
      %s42 = scalar_select %p41, 0, %s40
      %s43 = ssub.s32 %s30, %s42
      %s44 = ssub.s32 %s31, %s38
      %s45 = sor.u32 %s43, %s44
      %p46 = scmp.eq.s32.totalorder %s45, 0
      %s48 = sadd.s32 %s47, 1
      %s49 = scalar_select %p46, %s47, %s48
      %p52 = pneg %p46
      %p53 = scmp.eq.s32.totalorder %s23, 3
      %p54 = por %p52, %p53
      %p55 = scmp.ne.s32.totalorder %s47, %s50
      %p56 = scmp.eq.s32.totalorder %s23, 0
      %p57 = por %p55, %p56
      %p58 = scmp.ne.s32.totalorder %s47, %s50
      %p59 = scmp.eq.s32.totalorder %s28, 3
      %p60 = por %p58, %p59
      %p61 = scmp.ne.s32.totalorder %s50, %s51
      %p62 = scmp.eq.s32.totalorder %s28, 0
      %p63 = por %p61, %p62
      %p64 = scmp.ne.s32.totalorder %s50, %s51
      %p65 = scmp.eq.s32.totalorder %s29, 3
      %p66 = por %p64, %p65
      %p68 = scmp.ne.s32.totalorder %s51, %s67
      %p69 = scmp.eq.s32.totalorder %s29, 0
      %p70 = por %p68, %p69
      %s72 = sadd.s32 %s71, 1
      %p75 = scmp.eq.s32.totalorder %s23, 3
      %p76 = scmp.ne.s32.totalorder %s71, %s73
      %p77 = scmp.eq.s32.totalorder %s23, 0
      %p78 = por %p76, %p77
      %p79 = scmp.ne.s32.totalorder %s71, %s73
      %p80 = scmp.eq.s32.totalorder %s28, 3
      %p81 = por %p79, %p80
      %p82 = scmp.ne.s32.totalorder %s73, %s74
      %p83 = scmp.eq.s32.totalorder %s28, 0
      %p84 = por %p82, %p83
      %p85 = scmp.ne.s32.totalorder %s73, %s74
      %p86 = scmp.eq.s32.totalorder %s29, 3
      %p87 = por %p85, %p86
      %p89 = scmp.ne.s32.totalorder %s74, %s88
      %p90 = scmp.eq.s32.totalorder %s29, 0
      %p91 = por %p89, %p90
      %s93 = sadd.s32 %s92, 1
      %p96 = scmp.eq.s32.totalorder %s23, 3
      %p97 = scmp.ne.s32.totalorder %s92, %s94
      %p98 = scmp.eq.s32.totalorder %s23, 0
      %p99 = por %p97, %p98
      %p100 = scmp.ne.s32.totalorder %s92, %s94
      %p101 = scmp.eq.s32.totalorder %s28, 3
      %p102 = por %p100, %p101
      %p103 = scmp.ne.s32.totalorder %s94, %s95
      %p104 = scmp.eq.s32.totalorder %s28, 0
      %p105 = por %p103, %p104
      %p106 = scmp.ne.s32.totalorder %s94, %s95
      %p107 = scmp.eq.s32.totalorder %s29, 3
      %p108 = por %p106, %p107
      %p110 = scmp.ne.s32.totalorder %s95, %s109
      %p111 = scmp.eq.s32.totalorder %s29, 0
      %p112 = por %p110, %p111
      %s114 = sadd.s32 %s113, 1
      %p117 = scmp.eq.s32.totalorder %s23, 3
      %p118 = scmp.ne.s32.totalorder %s113, %s115
      %p119 = scmp.eq.s32.totalorder %s23, 0
      %p120 = por %p118, %p119
      %p121 = scmp.ne.s32.totalorder %s113, %s115
      %p122 = scmp.eq.s32.totalorder %s28, 3
      %p123 = por %p121, %p122
      %p124 = scmp.ne.s32.totalorder %s115, %s116
      %p125 = scmp.eq.s32.totalorder %s28, 0
      %p126 = por %p124, %p125
      %p127 = scmp.ne.s32.totalorder %s115, %s116
      %p128 = scmp.eq.s32.totalorder %s29, 3
      %p129 = por %p127, %p128
      %p131 = scmp.ne.s32.totalorder %s116, %s130
      %p132 = scmp.eq.s32.totalorder %s29, 0
      %p133 = por %p131, %p132
      %s134 = ssub.s32 %s30, %s42
      %p135 = scmp.eq.s32.totalorder %s134, 0
      %s137 = sadd.s32 %s136, 1
      %s138 = scalar_select %p135, %s136, %s137
      %p141 = pneg %p135
      %p142 = scmp.eq.s32.totalorder %s23, 3
      %p143 = por %p141, %p142
      %p144 = scmp.ne.s32.totalorder %s136, %s139
      %p145 = scmp.eq.s32.totalorder %s23, 0
      %p146 = por %p144, %p145
      %p147 = scmp.ne.s32.totalorder %s136, %s139
      %p148 = scmp.eq.s32.totalorder %s28, 3
      %p149 = por %p147, %p148
      %p150 = scmp.ne.s32.totalorder %s139, %s140
      %p151 = scmp.eq.s32.totalorder %s28, 0
      %p152 = por %p150, %p151
      %p153 = scmp.ne.s32.totalorder %s139, %s140
      %p154 = scmp.eq.s32.totalorder %s29, 3
      %p155 = por %p153, %p154
      %p157 = scmp.ne.s32.totalorder %s140, %s156
      %p158 = scmp.eq.s32.totalorder %s29, 0
      %p159 = por %p157, %p158
      %s160 = ssub.s32 %s30, %s42
      %p161 = scmp.eq.s32.totalorder %s160, 0
      %s163 = sadd.s32 %s162, 1
      %s164 = scalar_select %p161, %s162, %s163
      %p167 = pneg %p161
      %p168 = scmp.eq.s32.totalorder %s23, 3
      %p169 = por %p167, %p168
      %p170 = scmp.ne.s32.totalorder %s162, %s165
      %p171 = scmp.eq.s32.totalorder %s23, 0
      %p172 = por %p170, %p171
      %p173 = scmp.ne.s32.totalorder %s162, %s165
      %p174 = scmp.eq.s32.totalorder %s28, 3
      %p175 = por %p173, %p174
      %p176 = scmp.ne.s32.totalorder %s165, %s166
      %p177 = scmp.eq.s32.totalorder %s28, 0
      %p178 = por %p176, %p177
      %p179 = scmp.ne.s32.totalorder %s165, %s166
      %p180 = scmp.eq.s32.totalorder %s29, 3
      %p181 = por %p179, %p180
      %p183 = scmp.ne.s32.totalorder %s166, %s182
      %p184 = scmp.eq.s32.totalorder %s29, 0
      %p185 = por %p183, %p184
      %p186 = scmp.le.s32.totalorder 1, %s23
      %p187 = scmp.lt.s32.totalorder %s23, 5
      %p188 = pnand %p186, %p187
      %p189 = pneg %p188
      // Predicated region
      $region9: #{tpu_custom_call.1} parent=5 // pred_check
        _
      $region10: #{tpu_custom_call.1} parent=5 // pred_check_branch
        %191 = sbr.rel (%p188) target = $region12
      $region11: #{tpu_custom_call.1} parent=5 // pred_region
        %s192 = ssub.s32 %s23, 1
        // Predicated region
        $region13: #{tpu_custom_call.1} parent=11 // pred_check
          %p193 = pneg %p84
        $region14: #{tpu_custom_call.1} parent=11 // pred_check_branch
          %195 = sbr.rel (%p193) target = $region16
        $region15: #{tpu_custom_call.1} parent=11 // pred_region
          %s197 = ssub.s32 1024, 1024
          %198 = vsyncadd [#allocation8], %s197
          %s199 = sshll.u32 [#allocation7], 4
          %s200 = int_to_ptr.vmem [resolvable:$true] %s199
          %205 = dma.hbm_to_vmem [thread:$0]  %s1, 1024, %s200, [#allocation8], 64, 64, 4
        $region16: #{tpu_custom_call.1} parent=11 // pred_fallthru
          _
        // Predicated region
        $region17: #{tpu_custom_call.1} parent=11 // pred_check
          %p206 = pneg %p105
        $region18: #{tpu_custom_call.1} parent=11 // pred_check_branch
          %208 = sbr.rel (%p206) target = $region20
        $region19: #{tpu_custom_call.1} parent=11 // pred_region
          %s210 = ssub.s32 1024, 1024
          %211 = vsyncadd [#allocation8], %s210
          %s212 = sshll.u32 [#allocation9], 4
          %s213 = int_to_ptr.vmem [resolvable:$true] %s212
          %218 = dma.hbm_to_vmem [thread:$0]  %s2, 1024, %s213, [#allocation8], 64, 64, 4
        $region20: #{tpu_custom_call.1} parent=11 // pred_fallthru
          _
        // Predicated region
        $region21: #{tpu_custom_call.1} parent=11 // pred_check
          %p219 = pneg %p126
        $region22: #{tpu_custom_call.1} parent=11 // pred_check_branch
          %221 = sbr.rel (%p219) target = $region24
        $region23: #{tpu_custom_call.1} parent=11 // pred_region
          %s223 = ssub.s32 1024, 1024
          %224 = vsyncadd [#allocation11], %s223
          %s225 = sshll.u32 [#allocation10], 4
          %s226 = int_to_ptr.vmem [resolvable:$true] %s225
          %231 = dma.hbm_to_vmem [thread:$0]  %s3, 1024, %s226, [#allocation11], 64, 64, 4
        $region24: #{tpu_custom_call.1} parent=11 // pred_fallthru
          _
      $region12: #{tpu_custom_call.1} parent=5 // pred_fallthru
        _
      %p232 = scmp.lt.s32.totalorder %s23, 4
      // Predicated region
      $region25: #{tpu_custom_call.1} parent=5 // pred_check
        %p233 = pneg %p232
      $region26: #{tpu_custom_call.1} parent=5 // pred_check_branch
        %235 = sbr.rel (%p233) target = $region28
      $region27: #{tpu_custom_call.1} parent=5 // pred_region
        // Predicated region
        $region29: #{tpu_custom_call.1} parent=27 // pred_check
          %p236 = pneg %p57
        $region30: #{tpu_custom_call.1} parent=27 // pred_check_branch
          %238 = sbr.rel (%p236) target = $region32
        $region31: #{tpu_custom_call.1} parent=27 // pred_region
          %s239 = sand.u32 %s47, 1
          %s240 = scalar_lea.sflag [#allocation5], %s239
          %s241 = sand.u32 %s47, 1
          %s242 = smul.addr %s241, 8
          %s243 = scalar_lea.vmem [#allocation4], %s242
          %s244 = smul.u32 2, %s31
          %s246 = ssub.s32 128, 128
          %247 = vsyncadd %s240, %s246
          %s248 = smul.addr %s30, 4
          %s249 = sadd.s32 %s244, %s248
          %s250 = smul.addr %s249, 64
          %s251 = scalar_lea.hbm %s0, %s250
          %s252 = sshll.u32 %s243, 4
          %s253 = int_to_ptr.vmem [resolvable:$true] %s252
          %258 = dma.hbm_to_vmem [thread:$0]  %s251, 128, %s253, %s240, 64, 64, 4
        $region32: #{tpu_custom_call.1} parent=27 // pred_fallthru
          _
      $region28: #{tpu_custom_call.1} parent=5 // pred_fallthru
        _
      %p259 = scmp.le.s32.totalorder 1, %s23
      %p260 = scmp.lt.s32.totalorder %s23, 5
      %p261 = pnand %p259, %p260
      %p262 = pneg %p261
      // Predicated region
      $region33: #{tpu_custom_call.1} parent=5 // pred_check
        _
      $region34: #{tpu_custom_call.1} parent=5 // pred_check_branch
        %264 = sbr.rel (%p261) target = $region36
      $region35: #{tpu_custom_call.1} parent=5 // pred_region
        %s265 = ssub.s32 %s23, 1
        %s266 = sand.u32 %s50, 1
        %s267 = scalar_lea.sflag [#allocation5], %s266
        %s268 = sand.u32 %s50, 1
        %s269 = smul.addr %s268, 8
        %s270 = scalar_lea.vmem [#allocation4], %s269
        // Predicated region
        $region37: #{tpu_custom_call.1} parent=35 // pred_check
          %p271 = pneg %p63
        $region38: #{tpu_custom_call.1} parent=35 // pred_check_branch
          %273 = sbr.rel (%p271) target = $region40
        $region39: #{tpu_custom_call.1} parent=35 // pred_region
          %274 = dma.done %s267, 128
        $region40: #{tpu_custom_call.1} parent=35 // pred_fallthru
          _
        // Predicated region
        $region41: #{tpu_custom_call.1} parent=35 // pred_check
          %p275 = pneg %p84
        $region42: #{tpu_custom_call.1} parent=35 // pred_check_branch
          %277 = sbr.rel (%p275) target = $region44
        $region43: #{tpu_custom_call.1} parent=35 // pred_region
          %278 = dma.done [#allocation8], 1024
        $region44: #{tpu_custom_call.1} parent=35 // pred_fallthru
          _
        // Predicated region
        $region45: #{tpu_custom_call.1} parent=35 // pred_check
          %p279 = pneg %p105
        $region46: #{tpu_custom_call.1} parent=35 // pred_check_branch
          %281 = sbr.rel (%p279) target = $region48
        $region47: #{tpu_custom_call.1} parent=35 // pred_region
          %282 = dma.done [#allocation8], 1024
        $region48: #{tpu_custom_call.1} parent=35 // pred_fallthru
          _
        // Predicated region
        $region49: #{tpu_custom_call.1} parent=35 // pred_check
          %p283 = pneg %p126
        $region50: #{tpu_custom_call.1} parent=35 // pred_check_branch
          %285 = sbr.rel (%p283) target = $region52
        $region51: #{tpu_custom_call.1} parent=35 // pred_region
          %286 = dma.done [#allocation11], 1024
        $region52: #{tpu_custom_call.1} parent=35 // pred_fallthru
          _
        %s287 = sand.u32 %s50, 1
        %s288 = scalar_lea.sflag [#allocation5], %s287
        %s289 = sand.u32 %s50, 1
        %s290 = smul.addr %s289, 8
        %s291 = scalar_lea.vmem [#allocation4], %s290
        %p292 = pneg %p63
        %p293 = pneg %p60
        %p294 = pneg %p84
        %p295 = pneg %p81
        %p296 = pneg %p105
        %p297 = pneg %p102
        %p298 = pneg %p126
        %p299 = pneg %p123
        %p300 = pneg %p152
        %p301 = pneg %p149
        %s302 = sand.u32 %s139, 1
        %s303 = scalar_lea.sflag [#allocation6], %s302
        %s304 = sand.u32 %s139, 1
        %s305 = smul.addr %s304, 64
        %s306 = scalar_lea.vmem [#allocation12], %s305
        %p307 = pneg %p178
        %p308 = pneg %p175
        %s309 = sand.u32 %s165, 1
        %s310 = scalar_lea.sflag [#allocation14], %s309
        %s311 = sand.u32 %s165, 1
        %s312 = scalar_lea.vmem [#allocation13], %s311
        %s313 = smul.u32 2, %s33
        %p315 = scmp.eq.s32.totalorder %s33, 0
        // Predicated region
        $region53: #{tpu_custom_call.1} parent=35 // pred_check
          %p316 = pneg %p315
        $region54: #{tpu_custom_call.1} parent=35 // pred_check_branch
          %318 = sbr.rel (%p316) target = $region56
        $region55: #{tpu_custom_call.1} parent=35 // pred_region
          %319 = vst [vmem:[#allocation2] sm:$0xff] 0.0
          %320 = vst [vmem:[#allocation2 + $0x8] sm:$0xff] 0.0
          %321 = vst [vmem:[#allocation2 + $0x10] sm:$0xff] 0.0
          %322 = vst [vmem:[#allocation2 + $0x18] sm:$0xff] 0.0
          %323 = vst [vmem:[#allocation2 + $0x20] sm:$0xff] 0.0
          %324 = vst [vmem:[#allocation2 + $0x28] sm:$0xff] 0.0
          %325 = vst [vmem:[#allocation2 + $0x30] sm:$0xff] 0.0
          %326 = vst [vmem:[#allocation2 + $0x38] sm:$0xff] 0.0
          %327 = vst [vmem:[#allocation2 + $0x40] sm:$0xff] 0.0
          %328 = vst [vmem:[#allocation2 + $0x48] sm:$0xff] 0.0
          %329 = vst [vmem:[#allocation2 + $0x50] sm:$0xff] 0.0
          %330 = vst [vmem:[#allocation2 + $0x58] sm:$0xff] 0.0
          %331 = vst [vmem:[#allocation2 + $0x60] sm:$0xff] 0.0
          %332 = vst [vmem:[#allocation2 + $0x68] sm:$0xff] 0.0
          %333 = vst [vmem:[#allocation2 + $0x70] sm:$0xff] 0.0
          %334 = vst [vmem:[#allocation2 + $0x78] sm:$0xff] 0.0
          %335 = vst [vmem:[#allocation3] sm:$0x1] 0.0
        $region56: #{tpu_custom_call.1} parent=35 // pred_fallthru
          _
        %v336 = vld [vmem:[%s270] sm:$0xf]
        %v337 = vld [vmem:[%s270 + $0x4] sm:$0xf]
        %v338 = vld [vmem:[#allocation7] sm:$0xf]
        %v339 = vld [vmem:[#allocation7 + $0x4] sm:$0xf]
        %v340 = vld [vmem:[#allocation7 + $0x8] sm:$0xf]
        %v341 = vld [vmem:[#allocation7 + $0xc] sm:$0xf]
        %v342 = vld [vmem:[#allocation7 + $0x10] sm:$0xf]
        %v343 = vld [vmem:[#allocation7 + $0x14] sm:$0xf]
        %v344 = vld [vmem:[#allocation7 + $0x18] sm:$0xf]
        %v345 = vld [vmem:[#allocation7 + $0x1c] sm:$0xf]
        %v346 = vld [vmem:[#allocation7 + $0x20] sm:$0xf]
        %v347 = vld [vmem:[#allocation7 + $0x24] sm:$0xf]
        %v348 = vld [vmem:[#allocation7 + $0x28] sm:$0xf]
        %v349 = vld [vmem:[#allocation7 + $0x2c] sm:$0xf]
        %v350 = vld [vmem:[#allocation7 + $0x30] sm:$0xf]
        %v351 = vld [vmem:[#allocation7 + $0x34] sm:$0xf]
        %v352 = vld [vmem:[#allocation7 + $0x38] sm:$0xf]
        %v353 = vld [vmem:[#allocation7 + $0x3c] sm:$0xf]
        %v356 = vunpack.c.l.b16 %v336
        %v357 = vunpack.c.l.b16 %v337
        %v358 = vpack.c.b16 %v357, %v356
        %v376 = vunpack.c.l.b16 %v338
        %v377 = vunpack.c.l.b16 %v339
        %v378 = vunpack.c.l.b16 %v340
        %v379 = vunpack.c.l.b16 %v341
        %v380 = vunpack.c.l.b16 %v342
        %v381 = vunpack.c.l.b16 %v343
        %v382 = vunpack.c.l.b16 %v344
        %v383 = vunpack.c.l.b16 %v345
        %v384 = vunpack.c.l.b16 %v346
        %v385 = vunpack.c.l.b16 %v347
        %v386 = vunpack.c.l.b16 %v348
        %v387 = vunpack.c.l.b16 %v349
        %v388 = vunpack.c.l.b16 %v350
        %v389 = vunpack.c.l.b16 %v351
        %v390 = vunpack.c.l.b16 %v352
        %v391 = vunpack.c.l.b16 %v353
        %v392 = vpack.c.b16 %v377, %v376
        %v393 = vpack.c.b16 %v379, %v378
        %v394 = vpack.c.b16 %v381, %v380
        %v395 = vpack.c.b16 %v383, %v382
        %v396 = vpack.c.b16 %v385, %v384
        %v397 = vpack.c.b16 %v387, %v386
        %v398 = vpack.c.b16 %v389, %v388
        %v399 = vpack.c.b16 %v391, %v390
        %408 = vmatprep.subr.bf16.mxu0 0
        %409 = vmatpush1.bf16.msra.mxu0 %v399
        %410 = vmatprep.subr.bf16.mxu0 0
        %411 = vmatpush1.bf16.msra.mxu0 %v398
        %412 = vmatprep.subr.bf16.mxu0 0
        %413 = vmatpush1.bf16.msra.mxu0 %v397
        %414 = vmatprep.subr.bf16.mxu0 0
        %415 = vmatpush1.bf16.msra.mxu0 %v396
        %416 = vmatprep.subr.bf16.mxu0 0
        %417 = vmatpush1.bf16.msra.mxu0 %v395
        %418 = vmatprep.subr.bf16.mxu0 0
        %419 = vmatpush1.bf16.msra.mxu0 %v394
        %420 = vmatprep.subr.bf16.mxu0 0
        %421 = vmatpush1.bf16.msra.mxu0 %v393
        %422 = vmatprep.subr.bf16.mxu0 0
        %423 = vmatpush1.bf16.msra.mxu0 %v392
        %424 = vmatprep.subr.bf16.mxu0 0
        %425 = vmatpush2.bf16.msra.mxu0 0
        %426 = vmatprep.subr.bf16.mxu0 0
        %427 = vmatpush2.bf16.msra.mxu0 0
        %428 = vmatprep.subr.bf16.mxu0 0
        %429 = vmatpush2.bf16.msra.mxu0 0
        %430 = vmatprep.subr.bf16.mxu0 0
        %431 = vmatpush2.bf16.msra.mxu0 0
        %432 = vmatprep.subr.bf16.mxu0 0
        %433 = vmatpush2.bf16.msra.mxu0 0
        %434 = vmatprep.subr.bf16.mxu0 0
        %435 = vmatpush2.bf16.msra.mxu0 0
        %436 = vmatprep.subr.bf16.mxu0 0
        %437 = vmatpush2.bf16.msra.mxu0 0
        %438 = vmatprep.subr.bf16.mxu0 0
        %439 = vmatpush2.bf16.msra.mxu0 0
        %440 = vmatprep.mubr.bf16.mxu0 0
        %441 = vmatmul.mubr.bf16.gmra.mxu0 %v358
        %v442 = vpop.f32.mrf.mxu0
        %v443 = vadd.f32 0.0, %v442
        %v444 = vpop.f32.mrf.mxu0
        %v445 = vpop.f32.mrf.mxu0
        %v446 = vadd.f32 0.0, %v445
        %v447 = vpop.f32.mrf.mxu0
        %448 = vdwg.mxu0
        %v449 = vld [vmem:[#allocation9] sm:$0xf]
        %v450 = vld [vmem:[#allocation9 + $0x4] sm:$0xf]
        %v451 = vld [vmem:[#allocation9 + $0x8] sm:$0xf]
        %v452 = vld [vmem:[#allocation9 + $0xc] sm:$0xf]
        %v453 = vld [vmem:[#allocation9 + $0x10] sm:$0xf]
        %v454 = vld [vmem:[#allocation9 + $0x14] sm:$0xf]
        %v455 = vld [vmem:[#allocation9 + $0x18] sm:$0xf]
        %v456 = vld [vmem:[#allocation9 + $0x1c] sm:$0xf]
        %v457 = vld [vmem:[#allocation9 + $0x20] sm:$0xf]
        %v458 = vld [vmem:[#allocation9 + $0x24] sm:$0xf]
        %v459 = vld [vmem:[#allocation9 + $0x28] sm:$0xf]
        %v460 = vld [vmem:[#allocation9 + $0x2c] sm:$0xf]
        %v461 = vld [vmem:[#allocation9 + $0x30] sm:$0xf]
        %v462 = vld [vmem:[#allocation9 + $0x34] sm:$0xf]
        %v463 = vld [vmem:[#allocation9 + $0x38] sm:$0xf]
        %v464 = vld [vmem:[#allocation9 + $0x3c] sm:$0xf]
        %v481 = vunpack.c.l.b16 %v449
        %v482 = vunpack.c.l.b16 %v450
        %v483 = vunpack.c.l.b16 %v451
        %v484 = vunpack.c.l.b16 %v452
        %v485 = vunpack.c.l.b16 %v453
        %v486 = vunpack.c.l.b16 %v454
        %v487 = vunpack.c.l.b16 %v455
        %v488 = vunpack.c.l.b16 %v456
        %v489 = vunpack.c.l.b16 %v457
        %v490 = vunpack.c.l.b16 %v458
        %v491 = vunpack.c.l.b16 %v459
        %v492 = vunpack.c.l.b16 %v460
        %v493 = vunpack.c.l.b16 %v461
        %v494 = vunpack.c.l.b16 %v462
        %v495 = vunpack.c.l.b16 %v463
        %v496 = vunpack.c.l.b16 %v464
        %v497 = vpack.c.b16 %v482, %v481
        %v498 = vpack.c.b16 %v484, %v483
        %v499 = vpack.c.b16 %v486, %v485
        %v500 = vpack.c.b16 %v488, %v487
        %v501 = vpack.c.b16 %v490, %v489
        %v502 = vpack.c.b16 %v492, %v491
        %v503 = vpack.c.b16 %v494, %v493
        %v504 = vpack.c.b16 %v496, %v495
        %513 = vmatprep.subr.bf16.mxu0 0
        %514 = vmatpush1.bf16.msra.mxu0 %v504
        %515 = vmatprep.subr.bf16.mxu0 0
        %516 = vmatpush1.bf16.msra.mxu0 %v503
        %517 = vmatprep.subr.bf16.mxu0 0
        %518 = vmatpush1.bf16.msra.mxu0 %v502
        %519 = vmatprep.subr.bf16.mxu0 0
        %520 = vmatpush1.bf16.msra.mxu0 %v501
        %521 = vmatprep.subr.bf16.mxu0 0
        %522 = vmatpush1.bf16.msra.mxu0 %v500
        %523 = vmatprep.subr.bf16.mxu0 0
        %524 = vmatpush1.bf16.msra.mxu0 %v499
        %525 = vmatprep.subr.bf16.mxu0 0
        %526 = vmatpush1.bf16.msra.mxu0 %v498
        %527 = vmatprep.subr.bf16.mxu0 0
        %528 = vmatpush1.bf16.msra.mxu0 %v497
        %529 = vmatprep.subr.bf16.mxu0 0
        %530 = vmatpush2.bf16.msra.mxu0 0
        %531 = vmatprep.subr.bf16.mxu0 0
        %532 = vmatpush2.bf16.msra.mxu0 0
        %533 = vmatprep.subr.bf16.mxu0 0
        %534 = vmatpush2.bf16.msra.mxu0 0
        %535 = vmatprep.subr.bf16.mxu0 0
        %536 = vmatpush2.bf16.msra.mxu0 0
        %537 = vmatprep.subr.bf16.mxu0 0
        %538 = vmatpush2.bf16.msra.mxu0 0
        %539 = vmatprep.subr.bf16.mxu0 0
        %540 = vmatpush2.bf16.msra.mxu0 0
        %541 = vmatprep.subr.bf16.mxu0 0
        %542 = vmatpush2.bf16.msra.mxu0 0
        %543 = vmatprep.subr.bf16.mxu0 0
        %544 = vmatpush2.bf16.msra.mxu0 0
        %545 = vmatprep.mubr.bf16.mxu0 0
        %546 = vmatmul.mubr.bf16.gmra.mxu0 %v358
        %v547 = vpop.f32.mrf.mxu0
        %v548 = vadd.f32 0.0, %v547
        %v549 = vpop.f32.mrf.mxu0
        %v550 = vpop.f32.mrf.mxu0
        %v551 = vadd.f32 0.0, %v550
        %v552 = vpop.f32.mrf.mxu0
        %553 = vdwg.mxu0
        %vm554 = vcmp.gt.f32.partialorder %v443, 0.0
        %vm555 = vcmp.gt.f32.partialorder %v446, 0.0
        %v556 = vadd.f32 %v443, 1.0
        %v557 = vadd.f32 %v446, 1.0
        %v558 = vmin.f32 %v443, 0.0
        %v559 = vmin.f32 %v446, 0.0
        %v560 = vmul.f32 %v558, 1.442695
        %v561 = vpow.pop %v560
        %v562 = vmul.f32 %v559, 1.442695
        %v563 = vpow.pop %v562
        %v564 = vsel %vm554, %v556, %v561
        %v565 = vsel %vm555, %v557, %v563
        %v566 = vmul.f32 %v548, 0.03125
        %v567 = vmul.f32 %v551, 0.03125
        %v568 = vld [vmem:[#allocation2] sm:$0xff]
        %v569 = vld [vmem:[#allocation2 + $0x8] sm:$0xff]
        %v570 = vld [vmem:[#allocation2 + $0x10] sm:$0xff]
        %v571 = vld [vmem:[#allocation2 + $0x18] sm:$0xff]
        %v572 = vld [vmem:[#allocation2 + $0x20] sm:$0xff]
        %v573 = vld [vmem:[#allocation2 + $0x28] sm:$0xff]
        %v574 = vld [vmem:[#allocation2 + $0x30] sm:$0xff]
        %v575 = vld [vmem:[#allocation2 + $0x38] sm:$0xff]
        %v576 = vld [vmem:[#allocation2 + $0x40] sm:$0xff]
        %v577 = vld [vmem:[#allocation2 + $0x48] sm:$0xff]
        %v578 = vld [vmem:[#allocation2 + $0x50] sm:$0xff]
        %v579 = vld [vmem:[#allocation2 + $0x58] sm:$0xff]
        %v580 = vld [vmem:[#allocation2 + $0x60] sm:$0xff]
        %v581 = vld [vmem:[#allocation2 + $0x68] sm:$0xff]
        %v582 = vld [vmem:[#allocation2 + $0x70] sm:$0xff]
        %v583 = vld [vmem:[#allocation2 + $0x78] sm:$0xff]
        %v584 = vpack.c.bf16 %v565, %v564
        %v585 = vpack.c.bf16 %v567, %v566
        %586 = vxpose.xlu0.c.b16.start [1/8] %v584, 128
        %587 = vxpose.xlu0.c.b16.cont [2/8] 0, 128
        %588 = vxpose.xlu0.c.b16.cont [3/8] 0, 128
        %589 = vxpose.xlu0.c.b16.cont [4/8] 0, 128
        %590 = vxpose.xlu0.c.b16.cont [5/8] 0, 128
        %591 = vxpose.xlu0.c.b16.cont [6/8] 0, 128
        %592 = vxpose.xlu0.c.b16.cont [7/8] 0, 128
        %593 = vxpose.xlu0.c.b16.end [8/8] 0, 128
        %v594 = vpop.trf.xlu0
        %v595 = vpop.trf.xlu0
        %v596 = vpop.trf.xlu0
        %v597 = vpop.trf.xlu0
        %v598 = vpop.trf.xlu0
        %v599 = vpop.trf.xlu0
        %v600 = vpop.trf.xlu0
        %v601 = vpop.trf.xlu0
        %vm602 = vcmask 130048
        %v604 = vsel %vm602, %v594, 0
        %v607 = vsel %vm602, %v595, 0
        %v610 = vsel %vm602, %v596, 0
        %v613 = vsel %vm602, %v597, 0
        %v616 = vsel %vm602, %v598, 0
        %v619 = vsel %vm602, %v599, 0
        %v622 = vsel %vm602, %v600, 0
        %v625 = vsel %vm602, %v601, 0
        %627 = vmatprep.subr.bf16.mxu0 0
        %628 = vmatpush1.bf16.msra.mxu0 0
        %629 = vmatprep.subr.bf16.mxu0 0
        %630 = vmatpush1.bf16.msra.mxu0 0
        %631 = vmatprep.subr.bf16.mxu0 0
        %632 = vmatpush1.bf16.msra.mxu0 0
        %633 = vmatprep.subr.bf16.mxu0 0
        %634 = vmatpush1.bf16.msra.mxu0 0
        %635 = vmatprep.subr.bf16.mxu0 0
        %636 = vmatpush1.bf16.msra.mxu0 0
        %637 = vmatprep.subr.bf16.mxu0 0
        %638 = vmatpush1.bf16.msra.mxu0 0
        %639 = vmatprep.subr.bf16.mxu0 0
        %640 = vmatpush1.bf16.msra.mxu0 0
        %641 = vmatprep.subr.bf16.mxu0 0
        %642 = vmatpush1.bf16.msra.mxu0 %v585
        %643 = vmatprep.subr.bf16.mxu0 0
        %644 = vmatpush2.bf16.msra.mxu0 0
        %645 = vmatprep.subr.bf16.mxu0 0
        %646 = vmatpush2.bf16.msra.mxu0 0
        %647 = vmatprep.subr.bf16.mxu0 0
        %648 = vmatpush2.bf16.msra.mxu0 0
        %649 = vmatprep.subr.bf16.mxu0 0
        %650 = vmatpush2.bf16.msra.mxu0 0
        %651 = vmatprep.subr.bf16.mxu0 0
        %652 = vmatpush2.bf16.msra.mxu0 0
        %653 = vmatprep.subr.bf16.mxu0 0
        %654 = vmatpush2.bf16.msra.mxu0 0
        %655 = vmatprep.subr.bf16.mxu0 0
        %656 = vmatpush2.bf16.msra.mxu0 0
        %657 = vmatprep.subr.bf16.mxu0 0
        %658 = vmatpush2.bf16.msra.mxu0 0
        %659 = vmatprep.mubr.bf16.mxu0 0
        %660 = vmatmul.mubr.bf16.gmra.mxu0 %v604
        %v661 = vpop.f32.mrf.mxu0
        %v662 = vadd.f32 0.0, %v661
        %v663 = vpop.f32.mrf.mxu0
        %v664 = vpop.f32.mrf.mxu0
        %v665 = vadd.f32 0.0, %v664
        %v666 = vpop.f32.mrf.mxu0
        %667 = vmatprep.mubr.bf16.mxu0 0
        %668 = vmatmul.mubr.bf16.gmra.mxu0 %v607
        %v669 = vpop.f32.mrf.mxu0
        %v670 = vadd.f32 0.0, %v669
        %v671 = vpop.f32.mrf.mxu0
        %v672 = vpop.f32.mrf.mxu0
        %v673 = vadd.f32 0.0, %v672
        %v674 = vpop.f32.mrf.mxu0
        %675 = vmatprep.mubr.bf16.mxu0 0
        %676 = vmatmul.mubr.bf16.gmra.mxu0 %v610
        %v677 = vpop.f32.mrf.mxu0
        %v678 = vadd.f32 0.0, %v677
        %v679 = vpop.f32.mrf.mxu0
        %v680 = vpop.f32.mrf.mxu0
        %v681 = vadd.f32 0.0, %v680
        %v682 = vpop.f32.mrf.mxu0
        %683 = vmatprep.mubr.bf16.mxu0 0
        %684 = vmatmul.mubr.bf16.gmra.mxu0 %v613
        %v685 = vpop.f32.mrf.mxu0
        %v686 = vadd.f32 0.0, %v685
        %v687 = vpop.f32.mrf.mxu0
        %v688 = vpop.f32.mrf.mxu0
        %v689 = vadd.f32 0.0, %v688
        %v690 = vpop.f32.mrf.mxu0
        %691 = vmatprep.mubr.bf16.mxu0 0
        %692 = vmatmul.mubr.bf16.gmra.mxu0 %v616
        %v693 = vpop.f32.mrf.mxu0
        %v694 = vadd.f32 0.0, %v693
        %v695 = vpop.f32.mrf.mxu0
        %v696 = vpop.f32.mrf.mxu0
        %v697 = vadd.f32 0.0, %v696
        %v698 = vpop.f32.mrf.mxu0
        %699 = vmatprep.mubr.bf16.mxu0 0
        %700 = vmatmul.mubr.bf16.gmra.mxu0 %v619
        %v701 = vpop.f32.mrf.mxu0
        %v702 = vadd.f32 0.0, %v701
        %v703 = vpop.f32.mrf.mxu0
        %v704 = vpop.f32.mrf.mxu0
        %v705 = vadd.f32 0.0, %v704
        %v706 = vpop.f32.mrf.mxu0
        %707 = vmatprep.mubr.bf16.mxu0 0
        %708 = vmatmul.mubr.bf16.gmra.mxu0 %v622
        %v709 = vpop.f32.mrf.mxu0
        %v710 = vadd.f32 0.0, %v709
        %v711 = vpop.f32.mrf.mxu0
        %v712 = vpop.f32.mrf.mxu0
        %v713 = vadd.f32 0.0, %v712
        %v714 = vpop.f32.mrf.mxu0
        %715 = vmatprep.mubr.bf16.mxu0 0
        %716 = vmatmul.mubr.bf16.gmra.mxu0 %v625
        %v717 = vpop.f32.mrf.mxu0
        %v718 = vadd.f32 0.0, %v717
        %v719 = vpop.f32.mrf.mxu0
        %v720 = vpop.f32.mrf.mxu0
        %v721 = vadd.f32 0.0, %v720
        %v722 = vpop.f32.mrf.mxu0
        %723 = vdwg.mxu0
        %v724 = vadd.f32 %v568, %v662
        %v725 = vadd.f32 %v569, %v665
        %v726 = vadd.f32 %v570, %v670
        %v727 = vadd.f32 %v571, %v673
        %v728 = vadd.f32 %v572, %v678
        %v729 = vadd.f32 %v573, %v681
        %v730 = vadd.f32 %v574, %v686
        %v731 = vadd.f32 %v575, %v689
        %v732 = vadd.f32 %v576, %v694
        %v733 = vadd.f32 %v577, %v697
        %v734 = vadd.f32 %v578, %v702
        %v735 = vadd.f32 %v579, %v705
        %v736 = vadd.f32 %v580, %v710
        %v737 = vadd.f32 %v581, %v713
        %v738 = vadd.f32 %v582, %v718
        %v739 = vadd.f32 %v583, %v721
        %740 = vst [vmem:[#allocation2] sm:$0xff] %v724
        %741 = vst [vmem:[#allocation2 + $0x8] sm:$0xff] %v725
        %742 = vst [vmem:[#allocation2 + $0x10] sm:$0xff] %v726
        %743 = vst [vmem:[#allocation2 + $0x18] sm:$0xff] %v727
        %744 = vst [vmem:[#allocation2 + $0x20] sm:$0xff] %v728
        %745 = vst [vmem:[#allocation2 + $0x28] sm:$0xff] %v729
        %746 = vst [vmem:[#allocation2 + $0x30] sm:$0xff] %v730
        %747 = vst [vmem:[#allocation2 + $0x38] sm:$0xff] %v731
        %748 = vst [vmem:[#allocation2 + $0x40] sm:$0xff] %v732
        %749 = vst [vmem:[#allocation2 + $0x48] sm:$0xff] %v733
        %750 = vst [vmem:[#allocation2 + $0x50] sm:$0xff] %v734
        %751 = vst [vmem:[#allocation2 + $0x58] sm:$0xff] %v735
        %752 = vst [vmem:[#allocation2 + $0x60] sm:$0xff] %v736
        %753 = vst [vmem:[#allocation2 + $0x68] sm:$0xff] %v737
        %754 = vst [vmem:[#allocation2 + $0x70] sm:$0xff] %v738
        %755 = vst [vmem:[#allocation2 + $0x78] sm:$0xff] %v739
        %v756 = vld [vmem:[#allocation3] sm:$0x1]
        %v757 = vadd.f32 %v564, %v565
        %v758 = vrot.slane %v757, 4
        %v759 = vadd.f32 %v757, %v758
        %v760 = vrot.slane %v759, 2
        %v761 = vadd.f32 %v759, %v760
        %v762 = vrot.slane %v761, 1
        %v763 = vadd.f32 %v761, %v762
        %v764 = vadd.f32 %v756, %v763
        %765 = vst [vmem:[#allocation3] sm:$0x1] %v764
        %p766 = scmp.eq.s32.totalorder %s33, 1
        // Predicated region
        $region57: #{tpu_custom_call.1} parent=35 // pred_check
          %p767 = pneg %p766
        $region58: #{tpu_custom_call.1} parent=35 // pred_check_branch
          %769 = sbr.rel (%p767) target = $region60
        $region59: #{tpu_custom_call.1} parent=35 // pred_region
          %v770 = vld [vmem:[#allocation2] sm:$0xff]
          %v771 = vld [vmem:[#allocation2 + $0x8] sm:$0xff]
          %v772 = vld [vmem:[#allocation2 + $0x10] sm:$0xff]
          %v773 = vld [vmem:[#allocation2 + $0x18] sm:$0xff]
          %v774 = vld [vmem:[#allocation2 + $0x20] sm:$0xff]
          %v775 = vld [vmem:[#allocation2 + $0x28] sm:$0xff]
          %v776 = vld [vmem:[#allocation2 + $0x30] sm:$0xff]
          %v777 = vld [vmem:[#allocation2 + $0x38] sm:$0xff]
          %v778 = vld [vmem:[#allocation2 + $0x40] sm:$0xff]
          %v779 = vld [vmem:[#allocation2 + $0x48] sm:$0xff]
          %v780 = vld [vmem:[#allocation2 + $0x50] sm:$0xff]
          %v781 = vld [vmem:[#allocation2 + $0x58] sm:$0xff]
          %v782 = vld [vmem:[#allocation2 + $0x60] sm:$0xff]
          %v783 = vld [vmem:[#allocation2 + $0x68] sm:$0xff]
          %v784 = vld [vmem:[#allocation2 + $0x70] sm:$0xff]
          %v785 = vld [vmem:[#allocation2 + $0x78] sm:$0xff]
          %v786 = vld [vmem:[#allocation10] sm:$0xf]
          %v787 = vld [vmem:[#allocation10 + $0x4] sm:$0xf]
          %v788 = vld [vmem:[#allocation10 + $0x8] sm:$0xf]
          %v789 = vld [vmem:[#allocation10 + $0xc] sm:$0xf]
          %v790 = vld [vmem:[#allocation10 + $0x10] sm:$0xf]
          %v791 = vld [vmem:[#allocation10 + $0x14] sm:$0xf]
          %v792 = vld [vmem:[#allocation10 + $0x18] sm:$0xf]
          %v793 = vld [vmem:[#allocation10 + $0x1c] sm:$0xf]
          %v794 = vld [vmem:[#allocation10 + $0x20] sm:$0xf]
          %v795 = vld [vmem:[#allocation10 + $0x24] sm:$0xf]
          %v796 = vld [vmem:[#allocation10 + $0x28] sm:$0xf]
          %v797 = vld [vmem:[#allocation10 + $0x2c] sm:$0xf]
          %v798 = vld [vmem:[#allocation10 + $0x30] sm:$0xf]
          %v799 = vld [vmem:[#allocation10 + $0x34] sm:$0xf]
          %v800 = vld [vmem:[#allocation10 + $0x38] sm:$0xf]
          %v801 = vld [vmem:[#allocation10 + $0x3c] sm:$0xf]
          %v802 = vunpack.c.l.bf16 %v786
          %v803 = vunpack.c.l.bf16 %v787
          %v804 = vunpack.c.l.bf16 %v788
          %v805 = vunpack.c.l.bf16 %v789
          %v806 = vunpack.c.l.bf16 %v790
          %v807 = vunpack.c.l.bf16 %v791
          %v808 = vunpack.c.l.bf16 %v792
          %v809 = vunpack.c.l.bf16 %v793
          %v810 = vunpack.c.l.bf16 %v794
          %v811 = vunpack.c.l.bf16 %v795
          %v812 = vunpack.c.l.bf16 %v796
          %v813 = vunpack.c.l.bf16 %v797
          %v814 = vunpack.c.l.bf16 %v798
          %v815 = vunpack.c.l.bf16 %v799
          %v816 = vunpack.c.l.bf16 %v800
          %v817 = vunpack.c.l.bf16 %v801
          %v818 = vmul.f32 %v770, %v802
          %v819 = vmul.f32 %v771, %v803
          %v820 = vmul.f32 %v772, %v804
          %v821 = vmul.f32 %v773, %v805
          %v822 = vmul.f32 %v774, %v806
          %v823 = vmul.f32 %v775, %v807
          %v824 = vmul.f32 %v776, %v808
          %v825 = vmul.f32 %v777, %v809
          %v826 = vmul.f32 %v778, %v810
          %v827 = vmul.f32 %v779, %v811
          %v828 = vmul.f32 %v780, %v812
          %v829 = vmul.f32 %v781, %v813
          %v830 = vmul.f32 %v782, %v814
          %v831 = vmul.f32 %v783, %v815
          %v832 = vmul.f32 %v784, %v816
          %v833 = vmul.f32 %v785, %v817
          %v834 = vpack.c.bf16 %v819, %v818
          %v835 = vpack.c.bf16 %v821, %v820
          %v836 = vpack.c.bf16 %v823, %v822
          %v837 = vpack.c.bf16 %v825, %v824
          %v838 = vpack.c.bf16 %v827, %v826
          %v839 = vpack.c.bf16 %v829, %v828
          %v840 = vpack.c.bf16 %v831, %v830
          %v841 = vpack.c.bf16 %v833, %v832
          %v850 = vunpack.c.l.b16 %v834
          %v851 = vunpack.c.h.b16 %v834
          %v852 = vunpack.c.l.b16 %v835
          %v853 = vunpack.c.h.b16 %v835
          %v854 = vunpack.c.l.b16 %v836
          %v855 = vunpack.c.h.b16 %v836
          %v856 = vunpack.c.l.b16 %v837
          %v857 = vunpack.c.h.b16 %v837
          %v858 = vunpack.c.l.b16 %v838
          %v859 = vunpack.c.h.b16 %v838
          %v860 = vunpack.c.l.b16 %v839
          %v861 = vunpack.c.h.b16 %v839
          %v862 = vunpack.c.l.b16 %v840
          %v863 = vunpack.c.h.b16 %v840
          %v864 = vunpack.c.l.b16 %v841
          %v865 = vunpack.c.h.b16 %v841
          %v866 = vpack.c.b16 %v850, %v850
          %v867 = vpack.c.b16 %v851, %v851
          %v868 = vpack.c.b16 %v852, %v852
          %v869 = vpack.c.b16 %v853, %v853
          %v870 = vpack.c.b16 %v854, %v854
          %v871 = vpack.c.b16 %v855, %v855
          %v872 = vpack.c.b16 %v856, %v856
          %v873 = vpack.c.b16 %v857, %v857
          %v874 = vpack.c.b16 %v858, %v858
          %v875 = vpack.c.b16 %v859, %v859
          %v876 = vpack.c.b16 %v860, %v860
          %v877 = vpack.c.b16 %v861, %v861
          %v878 = vpack.c.b16 %v862, %v862
          %v879 = vpack.c.b16 %v863, %v863
          %v880 = vpack.c.b16 %v864, %v864
          %v881 = vpack.c.b16 %v865, %v865
          %898 = vst [vmem:[%s306] sm:$0xf] %v866
          %899 = vst [vmem:[%s306 + $0x4] sm:$0xf] %v867
          %900 = vst [vmem:[%s306 + $0x8] sm:$0xf] %v868
          %901 = vst [vmem:[%s306 + $0xc] sm:$0xf] %v869
          %902 = vst [vmem:[%s306 + $0x10] sm:$0xf] %v870
          %903 = vst [vmem:[%s306 + $0x14] sm:$0xf] %v871
          %904 = vst [vmem:[%s306 + $0x18] sm:$0xf] %v872
          %905 = vst [vmem:[%s306 + $0x1c] sm:$0xf] %v873
          %906 = vst [vmem:[%s306 + $0x20] sm:$0xf] %v874
          %907 = vst [vmem:[%s306 + $0x24] sm:$0xf] %v875
          %908 = vst [vmem:[%s306 + $0x28] sm:$0xf] %v876
          %909 = vst [vmem:[%s306 + $0x2c] sm:$0xf] %v877
          %910 = vst [vmem:[%s306 + $0x30] sm:$0xf] %v878
          %911 = vst [vmem:[%s306 + $0x34] sm:$0xf] %v879
          %912 = vst [vmem:[%s306 + $0x38] sm:$0xf] %v880
          %913 = vst [vmem:[%s306 + $0x3c] sm:$0xf] %v881
          %v914 = vld [vmem:[#allocation3] sm:$0x1]
          %915 = vst [vmem:[%s312] sm:$0x1] %v914
        $region60: #{tpu_custom_call.1} parent=35 // pred_fallthru
          _
        %s916 = sand.u32 %s139, 1
        %s917 = scalar_lea.sflag [#allocation6], %s916
        %s918 = sand.u32 %s139, 1
        %s919 = smul.addr %s918, 64
        %s920 = scalar_lea.vmem [#allocation12], %s919
        %s921 = sand.u32 %s165, 1
        %s922 = scalar_lea.sflag [#allocation14], %s921
        %s923 = sand.u32 %s165, 1
        %s924 = scalar_lea.vmem [#allocation13], %s923
        // Predicated region
        $region61: #{tpu_custom_call.1} parent=35 // pred_check
          %p925 = pneg %p149
        $region62: #{tpu_custom_call.1} parent=35 // pred_check_branch
          %927 = sbr.rel (%p925) target = $region64
        $region63: #{tpu_custom_call.1} parent=35 // pred_region
          %s929 = ssub.s32 1024, 1024
          %930 = vsyncadd %s917, %s929
          %s931 = smul.addr %s32, 16
          %s932 = smul.addr %s931, 64
          %s933 = scalar_lea.hbm %s4, %s932
          %s934 = sshll.u32 %s920, 4
          %s935 = int_to_ptr.vmem [resolvable:$true] %s934
          %940 = dma.vmem_to_hbm [thread:$0]  %s935, 1024, %s933, %s917, 64, 64, 4
        $region64: #{tpu_custom_call.1} parent=35 // pred_fallthru
          _
        // Predicated region
        $region65: #{tpu_custom_call.1} parent=35 // pred_check
          %p941 = pneg %p175
        $region66: #{tpu_custom_call.1} parent=35 // pred_check_branch
          %943 = sbr.rel (%p941) target = $region68
        $region67: #{tpu_custom_call.1} parent=35 // pred_region
          %s945 = ssub.s32 16, 16
          %946 = vsyncadd %s922, %s945
          %s947 = smul.addr %s32, 16
          %s948 = scalar_lea.hbm %s5, %s947
          %s950 = sshll.u32 %s924, 4
          %s951 = int_to_ptr.vmem [resolvable:$true] %s950
          %953 = dma.vmem_to_hbm [thread:$0]  %s951, 16, %s948, %s922
        $region68: #{tpu_custom_call.1} parent=35 // pred_fallthru
          _
      $region36: #{tpu_custom_call.1} parent=5 // pred_fallthru
        _
      %p954 = scmp.le.s32.totalorder 2, %s23
      // Predicated region
      $region69: #{tpu_custom_call.1} parent=5 // pred_check
        %p955 = pneg %p954
      $region70: #{tpu_custom_call.1} parent=5 // pred_check_branch
        %957 = sbr.rel (%p955) target = $region72
      $region71: #{tpu_custom_call.1} parent=5 // pred_region
        %s958 = ssub.s32 %s23, 2
        // Predicated region
        $region73: #{tpu_custom_call.1} parent=71 // pred_check
          %p959 = pneg %p155
        $region74: #{tpu_custom_call.1} parent=71 // pred_check_branch
          %961 = sbr.rel (%p959) target = $region76
        $region75: #{tpu_custom_call.1} parent=71 // pred_region
          %s962 = sand.u32 %s140, 1
          %s963 = scalar_lea.sflag [#allocation6], %s962
          %s964 = sand.u32 %s140, 1
          %s965 = smul.addr %s964, 64
          %s966 = scalar_lea.vmem [#allocation12], %s965
          %967 = dma.done %s963, 1024
        $region76: #{tpu_custom_call.1} parent=71 // pred_fallthru
          _
        // Predicated region
        $region77: #{tpu_custom_call.1} parent=71 // pred_check
          %p968 = pneg %p181
        $region78: #{tpu_custom_call.1} parent=71 // pred_check_branch
          %970 = sbr.rel (%p968) target = $region80
        $region79: #{tpu_custom_call.1} parent=71 // pred_region
          %s971 = sand.u32 %s166, 1
          %s972 = scalar_lea.sflag [#allocation14], %s971
          %s973 = sand.u32 %s166, 1
          %s974 = scalar_lea.vmem [#allocation13], %s973
          %975 = dma.done %s972, 16
        $region80: #{tpu_custom_call.1} parent=71 // pred_fallthru
          _
      $region72: #{tpu_custom_call.1} parent=5 // pred_fallthru
        _
    $region6: #{tpu_custom_call.1} parent=1 // loop_footer
      %s27 = sadd.s32 1, %s23
    $region7: #{tpu_custom_call.1} parent=1 // loop_footer_branch
      %22 = sbr.rel target = $region3
    $region8: #{tpu_custom_call.1} parent=1 // loop_exit
      _
    %976 = vsyncpa [#allocation5], 1
    %s977 = scalar_lea.sflag [#allocation5], 1
    %978 = vsyncpa %s977, 1
    %979 = vsyncpa [#allocation8], 1
    %980 = vsyncpa [#allocation11], 1
    %981 = vsyncpa [#allocation6], 1
    %s982 = scalar_lea.sflag [#allocation6], 1
    %983 = vsyncpa %s982, 1
    %984 = vsyncpa [#allocation14], 1
    %s985 = scalar_lea.sflag [#allocation14], 1
    %986 = vsyncpa %s985, 1

</llo_original>
